<compile_context>
chip_gen: v5e
topology: v5e:2x2
jax: 0.10.0
libtpu: 0.0.40
codegen_flags: <defaults>
</compile_context>

<pallas_src>
import jax
import jax.numpy as jnp
from jax.experimental import pallas as pl
from jax.experimental.pallas import tpu as pltpu

_LANES = 128
_TARGET_TILE_BYTES = 2 << 20  # ~2 MiB per tile; 4x (dbl-buffered in+out) = 8 MiB


def _copy_kernel(x_ref, o_ref):
    # Element-order-preserving copy of the current (tile_rows, 128) tile.
    o_ref[...] = x_ref[...]


def _resolve_shape(total, shape):
    """Handle a single -1 dimension like torch.Tensor.view does."""
    # Accept both Reshape(2, -1) and Reshape((2, -1)) styles.
    if len(shape) == 1 and isinstance(shape[0], (tuple, list)):
        shape = tuple(shape[0])
    shape = list(shape)
    if shape.count(-1) > 1:
        raise ValueError("only one -1 dimension allowed")
    if -1 in shape:
        known = 1
        for s in shape:
            if s != -1:
                known *= s
        shape[shape.index(-1)] = total // known
    prod = 1
    for s in shape:
        prod *= s
    if prod != total:
        raise ValueError(f"cannot view {total} elements as {tuple(shape)}")
    return tuple(shape)


def _tile_geometry(total, itemsize):
    """Pick (tile_rows, padded_rows) for a (rows, 128) lane-dense fold."""
    # dtype-aware native sublane count: f32 -> 8, bf16 -> 16, int8/fp8 -> 32.
    packing = max(1, 4 // itemsize)
    sub = 8 * packing
    # Rows per ~2 MiB tile, rounded down to the native sublane multiple.
    target_rows = max(sub, (_TARGET_TILE_BYTES // (itemsize * _LANES)) // sub * sub)
    rows_needed = pl.cdiv(total, _LANES)
    n_tiles = max(1, pl.cdiv(rows_needed, target_rows))
    # Balance rows across tiles, rounded up to the sublane multiple, so the
    # grid is clean and worst-case padding stays at O(n_tiles * sub * 128).
    tile_rows = pl.cdiv(pl.cdiv(rows_needed, n_tiles), sub) * sub
    padded_rows = n_tiles * tile_rows
    return tile_rows, padded_rows, n_tiles


def pallas_reshape(x, *target_shape):
    """Equivalent of Reshape(*target_shape)(x), i.e. x.view(target_shape)."""
    total = x.size
    target_shape = _resolve_shape(total, target_shape)
    if total == 0:
        return jnp.reshape(x, target_shape)

    itemsize = x.dtype.itemsize
    tile_rows, padded_rows, n_tiles = _tile_geometry(total, itemsize)
    padded_total = padded_rows * _LANES
    tile_bytes = tile_rows * _LANES * itemsize

    # Fold the flat row-major buffer into a lane-dense (rows, 128) slab,
    # padding the tail so every block is a full unmasked tile.
    flat = jnp.reshape(x, (total,))
    if padded_total != total:
        flat = jnp.pad(flat, (0, padded_total - total))
    x2d = jnp.reshape(flat, (padded_rows, _LANES))

    # Budget VMEM for double-buffered input + output tiles plus headroom;
    # stays well inside every generation's scoped/physical VMEM.
    vmem_limit = int(min(96 << 20, max(16 << 20, 5 * tile_bytes)))

    flat2d = pl.pallas_call(
        _copy_kernel,
        out_shape=jax.ShapeDtypeStruct((padded_rows, _LANES), x.dtype),
        grid_spec=pltpu.PrefetchScalarGridSpec(
            num_scalar_prefetch=0,
            grid=(n_tiles,),
            in_specs=[pl.BlockSpec((tile_rows, _LANES), lambda i: (i, 0))],
            out_specs=pl.BlockSpec((tile_rows, _LANES), lambda i: (i, 0)),
        ),
        compiler_params=pltpu.CompilerParams(
            dimension_semantics=("parallel",),
            vmem_limit_bytes=vmem_limit,
        ),
        # Identity copy: let XLA reuse (or elide) the buffer.
        input_output_aliases={0: 0},
        cost_estimate=pl.CostEstimate(
            flops=0,
            transcendentals=0,
            bytes_accessed=2 * padded_total * itemsize,
        ),
    )(x2d)

    # Metadata-only re-interpretation back to the requested shape (matches
    # torch.view's row-major element order).
    out_flat = jnp.reshape(flat2d, (padded_total,))
    if padded_total != total:
        out_flat = out_flat[:total]
    return jnp.reshape(out_flat, target_shape)


if __name__ == "__main__":
    key = jax.random.PRNGKey(0)
    # Small NCHW-style input, consistent with an autoencoder "flatten" usage.
    x = jax.random.normal(key, (2, 4, 16, 16), dtype=jnp.float32)

    # Reshape(2, -1): flatten everything but batch (common Autoencoder use).
    y = jax.block_until_ready(pallas_reshape(x, 2, -1))
    assert y.shape == (2, 4 * 16 * 16)
    assert y.dtype == x.dtype
    assert bool(jnp.array_equal(y, jnp.reshape(x, (2, -1))))

    # A second target shape to exercise the generic path.
    z = jax.block_until_ready(pallas_reshape(x, 8, 16, 16))
    assert bool(jnp.array_equal(z, jnp.reshape(x, (8, 16, 16))))

    # bf16 exercises the dtype-aware sublane tiling (16-row native tiles).
    xb = x.astype(jnp.bfloat16)
    yb = jax.block_until_ready(pallas_reshape(xb, 2, -1))
    assert bool(jnp.array_equal(yb, jnp.reshape(xb, (2, -1))))

    # Non-128-divisible element count exercises the padded-tail path.
    w = jax.random.normal(jax.random.PRNGKey(0), (3, 5, 7), dtype=jnp.float32)
    v = jax.block_until_ready(pallas_reshape(w, 5, 21))
    assert bool(jnp.array_equal(v, jnp.reshape(w, (5, 21))))

    print("KERNEL_OK")
</pallas_src>

<mosaic_0001>
module attributes {stable_mosaic.version = 11 : i64} {
  func.func @_copy_kernel(%arg0: i32, %arg1: memref<16x128xf32, #tpu.memory_space<vmem>>, %arg2: memref<16x128xf32, #tpu.memory_space<vmem>>) attributes {dimension_semantics = [#tpu.dimension_semantics<parallel>], iteration_bounds = array<i64: 1>, scalar_prefetch = 0 : i64, scratch_operands = 0 : i64, tpu.core_type = #tpu.core_type<tc>, window_params = [{transform_indices = @transform_0, window_bounds = array<i64: 16, 128>}, {transform_indices = @transform_1, window_bounds = array<i64: 16, 128>}]} {
    %c0 = arith.constant 0 : index
    %c0_0 = arith.constant 0 : index
    %0 = vector.load %arg1[%c0, %c0_0] : memref<16x128xf32, #tpu.memory_space<vmem>>, vector<16x128xf32>
    %c0_1 = arith.constant 0 : index
    %c0_2 = arith.constant 0 : index
    %1 = vector.load %arg2[%c0_1, %c0_2] : memref<16x128xf32, #tpu.memory_space<vmem>>, vector<16x128xf32>
    tpu.vector_store %arg2[%c0_1, %c0_2], %0 {strides = array<i32>} : memref<16x128xf32, #tpu.memory_space<vmem>>, vector<16x128xf32>,
    return
  }
  func.func @transform_0(%arg0: i32) -> (i32, i32) {
    %c0_i32 = arith.constant 0 : i32
    %c0_i32_0 = arith.constant 0 : i32
    return %arg0, %c0_i32 : i32, i32
  }
  func.func @transform_1(%arg0: i32) -> (i32, i32) {
    %c0_i32 = arith.constant 0 : i32
    %c0_i32_0 = arith.constant 0 : i32
    return %arg0, %c0_i32 : i32, i32
  }
}

</mosaic_0001>

<llo_original>
// kernel: tpu_custom_call.1
$region0: #{tpu_custom_call.1}
  #allocation0 [shape = 'u32[]', space=smem, size = 0x4, offset = 0x4, fixed_abs, tag = 'smem constant byte address 0x4 - core index']
  #allocation1 [shape = 'u32[72,128]{1,0:T(1,128)}', space=vmem, size = 0x9000, scoped, tag = 'internal scratch']
  %s0 = inlined_call_operand.hbm [shape: f32[16,128], index: 0, kind: input, shape index: {}, may-alias: {0,1}]
  %s1 = inlined_call_operand.hbm [shape: f32[16,128], index: 1, kind: output, shape index: {}, may-alias: {0,1}]
  %s2 = sld [smem:[#allocation0]]
  $region18: #{tpu_custom_call.1} parent=0
    _
  %s4 = ssub.s32 1, %s2
  %s5 = scalar_select 0, %s4, %s2
  $region1: #{tpu_custom_call.1} parent=0
    #allocation2 [shape = 'u8[8192]{0}', space=vmem, size = 0x2000, scoped, tag = 'input window, operand 0, single buffered']
    #allocation3 [shape = 's32[1]{0}', space=sflag, size = 0x4, scoped, tag = 'scoped memory for tpu_custom_call.1']
    #allocation4 [shape = 's32[1]{0}', space=sflag, size = 0x4, scoped, tag = 'scoped memory for tpu_custom_call.1']
    #allocation5 [shape = 'u8[8192]{0}', space=vmem, size = 0x2000, scoped, tag = 'output window, operand 0, single buffered']
    %6 = vsyncpa [#allocation3], 0
    %7 = vsyncpa [#allocation4], 0
    // Predicated region
    $region2: #{tpu_custom_call.1} parent=1 // pred_check
      _
    $region3: #{tpu_custom_call.1} parent=1 // pred_check_branch
      %9 = sbr.rel (0) target = $region5
    $region4: #{tpu_custom_call.1} parent=1 // pred_region
      %11 = vsyncadd [#allocation3], 0
      %s12 = sshll.u32 %s0, 4
      %s13 = int_to_ptr.hbm [resolvable:$true] %s12
      %s14 = sshll.u32 [#allocation2], 4
      %s15 = int_to_ptr.vmem [resolvable:$true] %s14
      %20 = dma.hbm_to_vmem [thread:$0]  %s13, 256, %s15, [#allocation3], 128, 128, 8
    $region5: #{tpu_custom_call.1} parent=1 // pred_fallthru
      _
    // Predicated region
    $region6: #{tpu_custom_call.1} parent=1 // pred_check
      _
    $region7: #{tpu_custom_call.1} parent=1 // pred_check_branch
      %22 = sbr.rel (0) target = $region9
    $region8: #{tpu_custom_call.1} parent=1 // pred_region
      %24 = dma.done [#allocation3], 256
    $region9: #{tpu_custom_call.1} parent=1 // pred_fallthru
      _
    %v25 = vld [vmem:[#allocation2] sm:$0xff]
    %v26 = vld [vmem:[#allocation2 + $0x8] sm:$0xff]
    %27 = vst [vmem:[#allocation5] sm:$0xff] %v25
    %28 = vst [vmem:[#allocation5 + $0x8] sm:$0xff] %v26
    // Predicated region
    $region10: #{tpu_custom_call.1} parent=1 // pred_check
      _
    $region11: #{tpu_custom_call.1} parent=1 // pred_check_branch
      %30 = sbr.rel (0) target = $region13
    $region12: #{tpu_custom_call.1} parent=1 // pred_region
      %32 = vsyncadd [#allocation4], 0
      %s33 = sshll.u32 [#allocation5], 4
      %s34 = int_to_ptr.vmem [resolvable:$true] %s33
      %s35 = sshll.u32 %s1, 4
      %s36 = int_to_ptr.hbm [resolvable:$true] %s35
      %41 = dma.vmem_to_hbm [thread:$0]  %s34, 256, %s36, [#allocation4], 128, 128, 8
    $region13: #{tpu_custom_call.1} parent=1 // pred_fallthru
      _
    // Predicated region
    $region14: #{tpu_custom_call.1} parent=1 // pred_check
      _
    $region15: #{tpu_custom_call.1} parent=1 // pred_check_branch
      %43 = sbr.rel (0) target = $region17
    $region16: #{tpu_custom_call.1} parent=1 // pred_region
      %45 = dma.done [#allocation4], 256
    $region17: #{tpu_custom_call.1} parent=1 // pred_fallthru
      _
    %46 = vsyncpa [#allocation3], 1
    %47 = vsyncpa [#allocation4], 1

</llo_original>
